<compile_context>
chip_gen: v5e
topology: v5e:2x2
jax: 0.10.0
libtpu: 0.0.40
codegen_flags: <defaults>
</compile_context>

<pallas_src>
import functools
import math

import jax
import jax.numpy as jnp
import numpy as np
from jax.experimental import pallas as pl
from jax.experimental.pallas import tpu as pltpu

BN_EPS = 1e-5
PRELU_A = 0.25  # nn.PReLU() default init


# ----------------------------------------------------------------------------- kernel

def poolsae_kernel(x_ref, we1_ref, we2_ref, wd1_ref, wd2_ref, whg_ref,
                   vecs_ref, sel_ref, out_ref, *, nb, F, H, E, P_out):
    NBH, NBE, NBF = nb * H, nb * E, nb * F
    WX = NBE + E                      # width of [enc_all | common]
    B = x_ref.shape[0]
    f32 = jnp.float32
    cdt = we2_ref.dtype               # matmul LHS compute dtype (bf16)

    # sublane-row indices into the lane-aligned parameter slab (every row starts at lane 0)
    (R_BE1, R_AE, R_G1, R_B1, R_BE2, R_GD0, R_BD0, R_BD1, R_AD,
     R_GD1, R_BD1B, R_BD2, R_GH, R_BH, R_HB) = range(15)

    def row(r, w):
        return vecs_ref[r:r + 1, :w]              # (1, w), lane offset 0

    sel = sel_ref[...]                            # (8, 2B) f32; rows 0/1 carry 1/B selectors

    def bn_stats(x):
        # batch mean and mean-of-squares via ONE MXU matmul (keeps the XLU free)
        xcat = jnp.concatenate([x, x * x], axis=0)            # (2B, W)
        s = jnp.dot(sel, xcat, preferred_element_type=f32)    # (8, W)
        return s[0:1, :], s[1:2, :]                           # mu, E[x^2]

    def bn_apply(x, mu, ex2, gamma, beta):
        var = jnp.maximum(ex2 - mu * mu, 0.0)     # clamp: single-pass var can go slightly negative
        return gamma * (x - mu) * jax.lax.rsqrt(var + BN_EPS) + beta

    def prelu(x, a_row):
        return jnp.where(x >= 0, x, a_row * x)

    # ---- encoder stage (all blocks fused through block-diagonal weights) ----
    x = x_ref[...]                                                      # (B, D) bf16
    h = jnp.dot(x, we1_ref[...], preferred_element_type=f32) + row(R_BE1, NBH)
    h = prelu(h, row(R_AE, NBH))
    mu_h, ex2_h = bn_stats(h)
    h = bn_apply(h, mu_h, ex2_h, row(R_G1, NBH), row(R_B1, NBH))
    # we2_ext carries E extra columns that compute the 'mean' fusion -> [enc_all | common]
    encx = jnp.dot(h.astype(cdt), we2_ref[...],
                   preferred_element_type=f32) + row(R_BE2, WX)         # (B, NB*E + E)

    # one stats pass over [enc_all | common]; shared by the decoder-input BN,
    # the per-block hazard BNs and the global hazard BN (per-feature stats are exact)
    mu_e, ex2_e = bn_stats(encx)

    # ---- decoder stage (wd1_ext has E zero rows, so the 'common' columns are ignored) ----
    d = bn_apply(encx, mu_e, ex2_e, row(R_GD0, WX), row(R_BD0, WX))
    d = jnp.dot(d.astype(cdt), wd1_ref[...], preferred_element_type=f32) + row(R_BD1, NBH)
    d = prelu(d, row(R_AD, NBH))
    mu_d, ex2_d = bn_stats(d)
    d = bn_apply(d, mu_d, ex2_d, row(R_GD1, NBH), row(R_BD1B, NBH))
    dec = jnp.dot(d.astype(cdt), wd2_ref[...],
                  preferred_element_type=f32) + row(R_BD2, NBF)         # (B, NB*F)

    # ---- all hazard heads (NB block heads + global) as ONE block-diagonal matmul ----
    z = bn_apply(encx, mu_e, ex2_e, row(R_GH, WX), row(R_BH, WX))       # (B, (NB+1)*E)
    haz = jnp.dot(z.astype(cdt), whg_ref[...],
                  preferred_element_type=f32) + row(R_HB, nb + 1)       # (B, NB+1)

    # ---- lane-dense single-store output slab (3 contiguous pieces + zero pad) ----
    pieces = [encx, dec, haz]
    total = WX + NBF + nb + 1
    if P_out > total:
        pieces.append(jnp.zeros((B, P_out - total), f32))
    out_ref[...] = jnp.concatenate(pieces, axis=1)


# ----------------------------------------------------------------------------- wrapper

def pool_sae_forward(x, blocks, params):
    NB = len(blocks)
    B, D = x.shape
    F = params["we1"].shape[1]
    H = params["we1"].shape[2]
    E = params["we2"].shape[2]
    NBH, NBE, NBF = NB * H, NB * E, NB * F
    WX = NBE + E
    f32, bf16 = jnp.float32, jnp.bfloat16

    # ---- host-side layout glue (one-time weight packing, no compute hoisting) ----
    # Block-diagonal We1 with rows permuted to the ORIGINAL x column order, so the
    # kernel consumes x as-is (no wrapper transpose / block gather of x).
    we1_bd = jnp.zeros((D, NBH), f32)
    for b, blk in enumerate(blocks):
        we1_bd = we1_bd.at[np.asarray(blk, np.int32), b * H:(b + 1) * H].set(params["we1"][b])

    # Block-diagonal We2 extended with E columns that compute common = mean_b enc_b.
    we2_ext = jnp.zeros((NBH, WX), f32)
    for b in range(NB):
        we2_ext = we2_ext.at[b * H:(b + 1) * H, b * E:(b + 1) * E].set(params["we2"][b])
        we2_ext = we2_ext.at[b * H:(b + 1) * H, NBE:WX].set(params["we2"][b] / NB)

    # Block-diagonal Wd1 with E extra zero rows (the 'common' columns of encx are ignored).
    wd1_ext = jnp.zeros((WX, NBH), f32)
    for b in range(NB):
        wd1_ext = wd1_ext.at[b * E:(b + 1) * E, b * H:(b + 1) * H].set(params["wd1"][b])

    wd2_bd = jnp.zeros((NBH, NBF), f32)
    for b in range(NB):
        wd2_bd = wd2_bd.at[b * H:(b + 1) * H, b * F:(b + 1) * F].set(params["wd2"][b])

    # Block-diagonal hazard weights: NB per-block heads + global head in one matmul.
    whg = jnp.zeros((WX, NB + 1), f32)
    for b in range(NB):
        whg = whg.at[b * E:(b + 1) * E, b].set(params["wh"][b][:, 0])
    whg = whg.at[NBE:WX, NB].set(params["wg"][:, 0])

    # Lane-aligned parameter slab: one parameter vector per sublane row (lane offset 0).
    PW = max(NBH, WX, NBF, NB + 1)
    PW = ((PW + 127) // 128) * 128

    def row(v):
        v = jnp.reshape(jnp.asarray(v, f32), (1, -1))
        return jnp.pad(v, ((0, 0), (0, PW - v.shape[1])))

    be2_ext = jnp.concatenate([params["be2"].reshape(1, NBE),
                               jnp.mean(params["be2"], axis=0).reshape(1, E)], axis=1)
    gd0_ext = jnp.concatenate([params["gd0"].reshape(1, NBE), jnp.ones((1, E), f32)], axis=1)
    bd0_ext = jnp.concatenate([params["bd0"].reshape(1, NBE), jnp.zeros((1, E), f32)], axis=1)
    gh_ext = jnp.concatenate([params["gh"].reshape(1, NBE), params["gg"]], axis=1)
    bh_ext = jnp.concatenate([params["bh"].reshape(1, NBE), params["bg"]], axis=1)
    hb_row = jnp.concatenate([params["bhb"].reshape(1, NB), params["bgb"]], axis=1)

    vecs = jnp.concatenate([
        row(params["be1"]),                                  # 0  R_BE1
        row(jnp.repeat(params["ae1"].reshape(NB), H)),       # 1  R_AE   (PReLU alpha lane row)
        row(params["g1"]),                                   # 2  R_G1
        row(params["b1"]),                                   # 3  R_B1
        row(be2_ext),                                        # 4  R_BE2  ([be2_all | mean(be2)])
        row(gd0_ext),                                        # 5  R_GD0
        row(bd0_ext),                                        # 6  R_BD0
        row(params["bd1"]),                                  # 7  R_BD1
        row(jnp.repeat(params["ad1"].reshape(NB), H)),       # 8  R_AD
        row(params["gd1"]),                                  # 9  R_GD1
        row(params["bd1b"]),                                 # 10 R_BD1B
        row(params["bd2"]),                                  # 11 R_BD2
        row(gh_ext),                                         # 12 R_GH   ([gh_all | gg])
        row(bh_ext),                                         # 13 R_BH   ([bh_all | bg])
        row(hb_row),                                         # 14 R_HB   (hazard biases)
    ], axis=0)

    # Selector rows for the MXU batch-stats matmul: row0 -> mean(x), row1 -> mean(x*x).
    sel_np = np.zeros((8, 2 * B), np.float32)
    sel_np[0, :B] = 1.0 / B
    sel_np[1, B:] = 1.0 / B
    sel = jnp.asarray(sel_np)

    total = WX + NBF + NB + 1
    P_out = ((total + 127) // 128) * 128

    vmem = pl.BlockSpec(memory_space=pltpu.MemorySpace.VMEM)

    out = pl.pallas_call(
        functools.partial(poolsae_kernel, nb=NB, F=F, H=H, E=E, P_out=P_out),
        out_shape=jax.ShapeDtypeStruct((B, P_out), jnp.float32),
        in_specs=[vmem] * 8,
        out_specs=vmem,
        compiler_params=pltpu.CompilerParams(vmem_limit_bytes=32 * 1024 * 1024),
    )(x.astype(bf16), we1_bd.astype(bf16), we2_ext.astype(bf16), wd1_ext.astype(bf16),
      wd2_bd.astype(bf16), whg.astype(bf16), vecs, sel)

    # ---- unpack the output slab: [enc_all | common | dec_all | hazards | pad] ----
    common = out[:, NBE:WX]
    off = WX
    dec = [out[:, off + b * F: off + (b + 1) * F] for b in range(NB)]
    off += NBF
    bhz = [out[:, off + b: off + b + 1] for b in range(NB)]
    haz = out[:, off + NB: off + NB + 1]

    original_blocks = [x[:, np.asarray(blk, np.int32)] for blk in blocks]
    # mirrors PyTorch return: (hazard, original_blocks, blocks_decoded, block_hazards, original_common)
    return haz, original_blocks, dec, bhz, common


# ----------------------------------------------------------------------------- params / reference

def init_params(key, nb, F, H, E):
    ks = iter(jax.random.split(key, 32))

    def lin(k, fan_in, shape):
        bound = 1.0 / math.sqrt(fan_in)
        return jax.random.uniform(k, shape, jnp.float32, -bound, bound)

    def bn_g(k, shape):
        return 1.0 + 0.1 * jax.random.uniform(k, shape, jnp.float32, -1.0, 1.0)

    def bn_b(k, shape):
        return 0.1 * jax.random.uniform(k, shape, jnp.float32, -1.0, 1.0)

    p = {}
    p["we1"] = lin(next(ks), F, (nb, F, H)); p["be1"] = lin(next(ks), F, (nb, 1, H))
    p["ae1"] = jnp.full((nb, 1, 1), PRELU_A, jnp.float32)
    p["g1"] = bn_g(next(ks), (nb, 1, H)); p["b1"] = bn_b(next(ks), (nb, 1, H))
    p["we2"] = lin(next(ks), H, (nb, H, E)); p["be2"] = lin(next(ks), H, (nb, 1, E))
    p["gd0"] = bn_g(next(ks), (nb, 1, E)); p["bd0"] = bn_b(next(ks), (nb, 1, E))
    p["wd1"] = lin(next(ks), E, (nb, E, H)); p["bd1"] = lin(next(ks), E, (nb, 1, H))
    p["ad1"] = jnp.full((nb, 1, 1), PRELU_A, jnp.float32)
    p["gd1"] = bn_g(next(ks), (nb, 1, H)); p["bd1b"] = bn_b(next(ks), (nb, 1, H))
    p["wd2"] = lin(next(ks), H, (nb, H, F)); p["bd2"] = lin(next(ks), H, (nb, 1, F))
    p["gh"] = bn_g(next(ks), (nb, 1, E)); p["bh"] = bn_b(next(ks), (nb, 1, E))
    p["wh"] = lin(next(ks), E, (nb, E, 1)); p["bhb"] = lin(next(ks), E, (nb, 1, 1))
    p["gg"] = bn_g(next(ks), (1, E)); p["bg"] = bn_b(next(ks), (1, E))
    p["wg"] = lin(next(ks), E, (E, 1)); p["bgb"] = lin(next(ks), E, (1, 1))
    return p


def _prelu(x, a):
    return jnp.where(x >= 0, x, a * x)


def _bn_train_ref(x, gamma, beta):
    # Two-pass form, mirrors nn.BatchNorm1d training mode (biased var, eps=1e-5).
    mu = jnp.mean(x, axis=0, keepdims=True)
    var = jnp.mean((x - mu) ** 2, axis=0, keepdims=True)
    return gamma * (x - mu) * jax.lax.rsqrt(var + BN_EPS) + beta


def reference_forward(x, blocks, p):
    """Pure-JAX f32 reference mirroring the PyTorch forward (training-mode BN)."""
    encs, decs, bhzs = [], [], []
    for ix, block in enumerate(blocks):
        xb = x[:, jnp.asarray(block)]
        h = xb @ p["we1"][ix] + p["be1"][ix]
        h = _prelu(h, p["ae1"][ix, 0, 0])
        h = _bn_train_ref(h, p["g1"][ix], p["b1"][ix])
        enc = h @ p["we2"][ix] + p["be2"][ix]
        d = _bn_train_ref(enc, p["gd0"][ix], p["bd0"][ix])
        d = d @ p["wd1"][ix] + p["bd1"][ix]
        d = _prelu(d, p["ad1"][ix, 0, 0])
        d = _bn_train_ref(d, p["gd1"][ix], p["bd1b"][ix])
        dec = d @ p["wd2"][ix] + p["bd2"][ix]
        z = _bn_train_ref(enc, p["gh"][ix], p["bh"][ix])
        bz = z @ p["wh"][ix] + p["bhb"][ix]
        encs.append(enc); decs.append(dec); bhzs.append(bz)
    common = jnp.mean(jnp.stack(encs, 0), axis=0)
    haz = _bn_train_ref(common, p["gg"], p["bg"]) @ p["wg"] + p["bgb"]
    return haz, decs, bhzs, common, encs


# ----------------------------------------------------------------------------- main

if __name__ == "__main__":
    # small shapes: batch=8, 3 feature blocks of 16 cols each (x: [8, 48]),
    # block_hidden_layer_size=32, block_embedding_dimension=8, hazard_hidden_layers=0
    B, NB, F, H, E = 8, 3, 16, 32, 8
    blocks = [list(range(b, NB * F, NB)) for b in range(NB)]  # interleaved column blocks

    key = jax.random.PRNGKey(0)
    kx, kp = jax.random.split(key)
    x = jax.random.normal(kx, (B, NB * F), jnp.float32)
    params = init_params(kp, NB, F, H, E)

    out = pool_sae_forward(x, blocks, params)
    out = jax.block_until_ready(out)
    haz, orig_blocks, decs, bhzs, common = out

    # sanity check vs pure-JAX f32 reference (kernel inputs/weights are bf16 -> loose tol)
    rhaz, rdecs, rbhzs, rcommon, rencs = reference_forward(x, blocks, params)
    np.testing.assert_allclose(np.asarray(haz), np.asarray(rhaz), atol=5e-2, rtol=5e-2)
    np.testing.assert_allclose(np.asarray(common), np.asarray(rcommon), atol=5e-2, rtol=5e-2)
    for i in range(NB):
        np.testing.assert_allclose(np.asarray(orig_blocks[i]),
                                   np.asarray(x[:, jnp.asarray(blocks[i])]), atol=1e-6, rtol=1e-6)
        np.testing.assert_allclose(np.asarray(decs[i]), np.asarray(rdecs[i]), atol=5e-2, rtol=5e-2)
        np.testing.assert_allclose(np.asarray(bhzs[i]), np.asarray(rbhzs[i]), atol=5e-2, rtol=5e-2)

    print("KERNEL_OK")
</pallas_src>

<mosaic_0001>
module attributes {stable_mosaic.version = 11 : i64} {
  func.func @poolsae_kernel(%arg0: memref<8x48xbf16, #tpu.memory_space<vmem>>, %arg1: memref<48x96xbf16, #tpu.memory_space<vmem>>, %arg2: memref<96x32xbf16, #tpu.memory_space<vmem>>, %arg3: memref<32x96xbf16, #tpu.memory_space<vmem>>, %arg4: memref<96x48xbf16, #tpu.memory_space<vmem>>, %arg5: memref<32x4xbf16, #tpu.memory_space<vmem>>, %arg6: memref<15x128xf32, #tpu.memory_space<vmem>>, %arg7: memref<8x16xf32, #tpu.memory_space<vmem>>, %arg8: memref<8x128xf32, #tpu.memory_space<vmem>>) attributes {dimension_semantics = [], scalar_prefetch = 0 : i64, scratch_operands = 0 : i64, tpu.core_type = #tpu.core_type<tc>} {
    %c0 = arith.constant 0 : index
    %c0_0 = arith.constant 0 : index
    %0 = vector.load %arg7[%c0, %c0_0] : memref<8x16xf32, #tpu.memory_space<vmem>>, vector<8x16xf32>
    %c0_1 = arith.constant 0 : index
    %c0_2 = arith.constant 0 : index
    %1 = vector.load %arg0[%c0_1, %c0_2] : memref<8x48xbf16, #tpu.memory_space<vmem>>, vector<8x48xbf16>
    %c0_3 = arith.constant 0 : index
    %c0_4 = arith.constant 0 : index
    %2 = vector.load %arg1[%c0_3, %c0_4] : memref<48x96xbf16, #tpu.memory_space<vmem>>, vector<48x96xbf16>
    %cst = arith.constant dense<0.000000e+00> : vector<8x96xf32>
    %3 = tpu.matmul %1, %2, %cst {dimension_numbers = #tpu.dot_dimension_numbers<[1], [0], [0], [1], [0, 0, 1, 1], [], []>} : vector<8x48xbf16>, vector<48x96xbf16>, vector<8x96xf32> -> vector<8x96xf32>
    %c0_5 = arith.constant 0 : index
    %c0_6 = arith.constant 0 : index
    %4 = vector.load %arg6[%c0_5, %c0_6] : memref<15x128xf32, #tpu.memory_space<vmem>>, vector<1x96xf32>
    %5 = vector.broadcast %4 : vector<1x96xf32> to vector<8x96xf32>
    %6 = arith.addf %3, %5 : vector<8x96xf32>
    %c1 = arith.constant 1 : index
    %c0_7 = arith.constant 0 : index
    %7 = vector.load %arg6[%c1, %c0_7] : memref<15x128xf32, #tpu.memory_space<vmem>>, vector<1x96xf32>
    %cst_8 = arith.constant 0.000000e+00 : f32
    %8 = vector.broadcast %cst_8 : f32 to vector<8x96xf32>
    %9 = arith.cmpf oge, %6, %8 : vector<8x96xf32>
    %10 = vector.broadcast %7 : vector<1x96xf32> to vector<8x96xf32>
    %11 = arith.mulf %10, %6 : vector<8x96xf32>
    %12 = arith.select %9, %6, %11 : vector<8x96xi1>, vector<8x96xf32>
    %13 = arith.mulf %12, %12 : vector<8x96xf32>
    %14 = tpu.concatenate %12, %13 in 0 : vector<8x96xf32>, vector<8x96xf32> -> vector<16x96xf32>
    %cst_9 = arith.constant dense<0.000000e+00> : vector<8x96xf32>
    %15 = tpu.matmul %0, %14, %cst_9 {dimension_numbers = #tpu.dot_dimension_numbers<[1], [0], [0], [1], [0, 0, 1, 1], [], []>} : vector<8x16xf32>, vector<16x96xf32>, vector<8x96xf32> -> vector<8x96xf32>
    %16 = vector.extract_strided_slice %15 {offsets = [0, 0], sizes = [1, 96], strides = [1, 1]} : vector<8x96xf32> to vector<1x96xf32>
    %17 = vector.extract_strided_slice %15 {offsets = [1, 0], sizes = [1, 96], strides = [1, 1]} : vector<8x96xf32> to vector<1x96xf32>
    %c2 = arith.constant 2 : index
    %c0_10 = arith.constant 0 : index
    %18 = vector.load %arg6[%c2, %c0_10] : memref<15x128xf32, #tpu.memory_space<vmem>>, vector<1x96xf32>
    %c3 = arith.constant 3 : index
    %c0_11 = arith.constant 0 : index
    %19 = vector.load %arg6[%c3, %c0_11] : memref<15x128xf32, #tpu.memory_space<vmem>>, vector<1x96xf32>
    %20 = arith.mulf %16, %16 : vector<1x96xf32>
    %21 = arith.subf %17, %20 : vector<1x96xf32>
    %cst_12 = arith.constant 0.000000e+00 : f32
    %22 = vector.broadcast %cst_12 : f32 to vector<1x96xf32>
    %23 = arith.maximumf %21, %22 : vector<1x96xf32>
    %24 = vector.broadcast %16 : vector<1x96xf32> to vector<8x96xf32>
    %25 = arith.subf %12, %24 : vector<8x96xf32>
    %26 = vector.broadcast %18 : vector<1x96xf32> to vector<8x96xf32>
    %27 = arith.mulf %26, %25 : vector<8x96xf32>
    %cst_13 = arith.constant 9.99999974E-6 : f32
    %28 = vector.broadcast %cst_13 : f32 to vector<1x96xf32>
    %29 = arith.addf %23, %28 : vector<1x96xf32>
    %30 = math.rsqrt %29 : vector<1x96xf32>
    %31 = vector.broadcast %30 : vector<1x96xf32> to vector<8x96xf32>
    %32 = arith.mulf %27, %31 : vector<8x96xf32>
    %33 = vector.broadcast %19 : vector<1x96xf32> to vector<8x96xf32>
    %34 = arith.addf %32, %33 : vector<8x96xf32>
    %35 = arith.truncf %34 : vector<8x96xf32> to vector<8x96xbf16>
    %c0_14 = arith.constant 0 : index
    %c0_15 = arith.constant 0 : index
    %36 = vector.load %arg2[%c0_14, %c0_15] : memref<96x32xbf16, #tpu.memory_space<vmem>>, vector<96x32xbf16>
    %cst_16 = arith.constant dense<0.000000e+00> : vector<8x32xf32>
    %37 = tpu.matmul %35, %36, %cst_16 {dimension_numbers = #tpu.dot_dimension_numbers<[1], [0], [0], [1], [0, 0, 1, 1], [], []>} : vector<8x96xbf16>, vector<96x32xbf16>, vector<8x32xf32> -> vector<8x32xf32>
    %c4 = arith.constant 4 : index
    %c0_17 = arith.constant 0 : index
    %38 = vector.load %arg6[%c4, %c0_17] : memref<15x128xf32, #tpu.memory_space<vmem>>, vector<1x32xf32>
    %39 = vector.broadcast %38 : vector<1x32xf32> to vector<8x32xf32>
    %40 = arith.addf %37, %39 : vector<8x32xf32>
    %41 = arith.mulf %40, %40 : vector<8x32xf32>
    %42 = tpu.concatenate %40, %41 in 0 : vector<8x32xf32>, vector<8x32xf32> -> vector<16x32xf32>
    %cst_18 = arith.constant dense<0.000000e+00> : vector<8x32xf32>
    %43 = tpu.matmul %0, %42, %cst_18 {dimension_numbers = #tpu.dot_dimension_numbers<[1], [0], [0], [1], [0, 0, 1, 1], [], []>} : vector<8x16xf32>, vector<16x32xf32>, vector<8x32xf32> -> vector<8x32xf32>
    %44 = vector.extract_strided_slice %43 {offsets = [0, 0], sizes = [1, 32], strides = [1, 1]} : vector<8x32xf32> to vector<1x32xf32>
    %45 = vector.extract_strided_slice %43 {offsets = [1, 0], sizes = [1, 32], strides = [1, 1]} : vector<8x32xf32> to vector<1x32xf32>
    %c5 = arith.constant 5 : index
    %c0_19 = arith.constant 0 : index
    %46 = vector.load %arg6[%c5, %c0_19] : memref<15x128xf32, #tpu.memory_space<vmem>>, vector<1x32xf32>
    %c6 = arith.constant 6 : index
    %c0_20 = arith.constant 0 : index
    %47 = vector.load %arg6[%c6, %c0_20] : memref<15x128xf32, #tpu.memory_space<vmem>>, vector<1x32xf32>
    %48 = arith.mulf %44, %44 : vector<1x32xf32>
    %49 = arith.subf %45, %48 : vector<1x32xf32>
    %cst_21 = arith.constant 0.000000e+00 : f32
    %50 = vector.broadcast %cst_21 : f32 to vector<1x32xf32>
    %51 = arith.maximumf %49, %50 : vector<1x32xf32>
    %52 = vector.broadcast %44 : vector<1x32xf32> to vector<8x32xf32>
    %53 = arith.subf %40, %52 : vector<8x32xf32>
    %54 = vector.broadcast %46 : vector<1x32xf32> to vector<8x32xf32>
    %55 = arith.mulf %54, %53 : vector<8x32xf32>
    %cst_22 = arith.constant 9.99999974E-6 : f32
    %56 = vector.broadcast %cst_22 : f32 to vector<1x32xf32>
    %57 = arith.addf %51, %56 : vector<1x32xf32>
    %58 = math.rsqrt %57 : vector<1x32xf32>
    %59 = vector.broadcast %58 : vector<1x32xf32> to vector<8x32xf32>
    %60 = arith.mulf %55, %59 : vector<8x32xf32>
    %61 = vector.broadcast %47 : vector<1x32xf32> to vector<8x32xf32>
    %62 = arith.addf %60, %61 : vector<8x32xf32>
    %63 = arith.truncf %62 : vector<8x32xf32> to vector<8x32xbf16>
    %c0_23 = arith.constant 0 : index
    %c0_24 = arith.constant 0 : index
    %64 = vector.load %arg3[%c0_23, %c0_24] : memref<32x96xbf16, #tpu.memory_space<vmem>>, vector<32x96xbf16>
    %cst_25 = arith.constant dense<0.000000e+00> : vector<8x96xf32>
    %65 = tpu.matmul %63, %64, %cst_25 {dimension_numbers = #tpu.dot_dimension_numbers<[1], [0], [0], [1], [0, 0, 1, 1], [], []>} : vector<8x32xbf16>, vector<32x96xbf16>, vector<8x96xf32> -> vector<8x96xf32>
    %c7 = arith.constant 7 : index
    %c0_26 = arith.constant 0 : index
    %66 = vector.load %arg6[%c7, %c0_26] : memref<15x128xf32, #tpu.memory_space<vmem>>, vector<1x96xf32>
    %67 = vector.broadcast %66 : vector<1x96xf32> to vector<8x96xf32>
    %68 = arith.addf %65, %67 : vector<8x96xf32>
    %c8 = arith.constant 8 : index
    %c0_27 = arith.constant 0 : index
    %69 = vector.load %arg6[%c8, %c0_27] : memref<15x128xf32, #tpu.memory_space<vmem>>, vector<1x96xf32>
    %cst_28 = arith.constant 0.000000e+00 : f32
    %70 = vector.broadcast %cst_28 : f32 to vector<8x96xf32>
    %71 = arith.cmpf oge, %68, %70 : vector<8x96xf32>
    %72 = vector.broadcast %69 : vector<1x96xf32> to vector<8x96xf32>
    %73 = arith.mulf %72, %68 : vector<8x96xf32>
    %74 = arith.select %71, %68, %73 : vector<8x96xi1>, vector<8x96xf32>
    %75 = arith.mulf %74, %74 : vector<8x96xf32>
    %76 = tpu.concatenate %74, %75 in 0 : vector<8x96xf32>, vector<8x96xf32> -> vector<16x96xf32>
    %cst_29 = arith.constant dense<0.000000e+00> : vector<8x96xf32>
    %77 = tpu.matmul %0, %76, %cst_29 {dimension_numbers = #tpu.dot_dimension_numbers<[1], [0], [0], [1], [0, 0, 1, 1], [], []>} : vector<8x16xf32>, vector<16x96xf32>, vector<8x96xf32> -> vector<8x96xf32>
    %78 = vector.extract_strided_slice %77 {offsets = [0, 0], sizes = [1, 96], strides = [1, 1]} : vector<8x96xf32> to vector<1x96xf32>
    %79 = vector.extract_strided_slice %77 {offsets = [1, 0], sizes = [1, 96], strides = [1, 1]} : vector<8x96xf32> to vector<1x96xf32>
    %c9 = arith.constant 9 : index
    %c0_30 = arith.constant 0 : index
    %80 = vector.load %arg6[%c9, %c0_30] : memref<15x128xf32, #tpu.memory_space<vmem>>, vector<1x96xf32>
    %c10 = arith.constant 10 : index
    %c0_31 = arith.constant 0 : index
    %81 = vector.load %arg6[%c10, %c0_31] : memref<15x128xf32, #tpu.memory_space<vmem>>, vector<1x96xf32>
    %82 = arith.mulf %78, %78 : vector<1x96xf32>
    %83 = arith.subf %79, %82 : vector<1x96xf32>
    %cst_32 = arith.constant 0.000000e+00 : f32
    %84 = vector.broadcast %cst_32 : f32 to vector<1x96xf32>
    %85 = arith.maximumf %83, %84 : vector<1x96xf32>
    %86 = vector.broadcast %78 : vector<1x96xf32> to vector<8x96xf32>
    %87 = arith.subf %74, %86 : vector<8x96xf32>
    %88 = vector.broadcast %80 : vector<1x96xf32> to vector<8x96xf32>
    %89 = arith.mulf %88, %87 : vector<8x96xf32>
    %cst_33 = arith.constant 9.99999974E-6 : f32
    %90 = vector.broadcast %cst_33 : f32 to vector<1x96xf32>
    %91 = arith.addf %85, %90 : vector<1x96xf32>
    %92 = math.rsqrt %91 : vector<1x96xf32>
    %93 = vector.broadcast %92 : vector<1x96xf32> to vector<8x96xf32>
    %94 = arith.mulf %89, %93 : vector<8x96xf32>
    %95 = vector.broadcast %81 : vector<1x96xf32> to vector<8x96xf32>
    %96 = arith.addf %94, %95 : vector<8x96xf32>
    %97 = arith.truncf %96 : vector<8x96xf32> to vector<8x96xbf16>
    %c0_34 = arith.constant 0 : index
    %c0_35 = arith.constant 0 : index
    %98 = vector.load %arg4[%c0_34, %c0_35] : memref<96x48xbf16, #tpu.memory_space<vmem>>, vector<96x48xbf16>
    %cst_36 = arith.constant dense<0.000000e+00> : vector<8x48xf32>
    %99 = tpu.matmul %97, %98, %cst_36 {dimension_numbers = #tpu.dot_dimension_numbers<[1], [0], [0], [1], [0, 0, 1, 1], [], []>} : vector<8x96xbf16>, vector<96x48xbf16>, vector<8x48xf32> -> vector<8x48xf32>
    %c11 = arith.constant 11 : index
    %c0_37 = arith.constant 0 : index
    %100 = vector.load %arg6[%c11, %c0_37] : memref<15x128xf32, #tpu.memory_space<vmem>>, vector<1x48xf32>
    %101 = vector.broadcast %100 : vector<1x48xf32> to vector<8x48xf32>
    %102 = arith.addf %99, %101 : vector<8x48xf32>
    %c12 = arith.constant 12 : index
    %c0_38 = arith.constant 0 : index
    %103 = vector.load %arg6[%c12, %c0_38] : memref<15x128xf32, #tpu.memory_space<vmem>>, vector<1x32xf32>
    %c13 = arith.constant 13 : index
    %c0_39 = arith.constant 0 : index
    %104 = vector.load %arg6[%c13, %c0_39] : memref<15x128xf32, #tpu.memory_space<vmem>>, vector<1x32xf32>
    %105 = arith.mulf %44, %44 : vector<1x32xf32>
    %106 = arith.subf %45, %105 : vector<1x32xf32>
    %cst_40 = arith.constant 0.000000e+00 : f32
    %107 = vector.broadcast %cst_40 : f32 to vector<1x32xf32>
    %108 = arith.maximumf %106, %107 : vector<1x32xf32>
    %109 = vector.broadcast %44 : vector<1x32xf32> to vector<8x32xf32>
    %110 = arith.subf %40, %109 : vector<8x32xf32>
    %111 = vector.broadcast %103 : vector<1x32xf32> to vector<8x32xf32>
    %112 = arith.mulf %111, %110 : vector<8x32xf32>
    %cst_41 = arith.constant 9.99999974E-6 : f32
    %113 = vector.broadcast %cst_41 : f32 to vector<1x32xf32>
    %114 = arith.addf %108, %113 : vector<1x32xf32>
    %115 = math.rsqrt %114 : vector<1x32xf32>
    %116 = vector.broadcast %115 : vector<1x32xf32> to vector<8x32xf32>
    %117 = arith.mulf %112, %116 : vector<8x32xf32>
    %118 = vector.broadcast %104 : vector<1x32xf32> to vector<8x32xf32>
    %119 = arith.addf %117, %118 : vector<8x32xf32>
    %120 = arith.truncf %119 : vector<8x32xf32> to vector<8x32xbf16>
    %c0_42 = arith.constant 0 : index
    %c0_43 = arith.constant 0 : index
    %121 = vector.load %arg5[%c0_42, %c0_43] : memref<32x4xbf16, #tpu.memory_space<vmem>>, vector<32x4xbf16>
    %cst_44 = arith.constant dense<0.000000e+00> : vector<8x4xf32>
    %122 = tpu.matmul %120, %121, %cst_44 {dimension_numbers = #tpu.dot_dimension_numbers<[1], [0], [0], [1], [0, 0, 1, 1], [], []>} : vector<8x32xbf16>, vector<32x4xbf16>, vector<8x4xf32> -> vector<8x4xf32>
    %c14 = arith.constant 14 : index
    %c0_45 = arith.constant 0 : index
    %123 = vector.load %arg6[%c14, %c0_45] : memref<15x128xf32, #tpu.memory_space<vmem>>, vector<1x4xf32>
    %124 = vector.broadcast %123 : vector<1x4xf32> to vector<8x4xf32>
    %125 = arith.addf %122, %124 : vector<8x4xf32>
    %cst_46 = arith.constant 0.000000e+00 : f32
    %126 = vector.broadcast %cst_46 : f32 to vector<8x44xf32>
    %127 = tpu.concatenate %40, %102, %125, %126 in 1 : vector<8x32xf32>, vector<8x48xf32>, vector<8x4xf32>, vector<8x44xf32> -> vector<8x128xf32>
    %c0_47 = arith.constant 0 : index
    %c0_48 = arith.constant 0 : index
    %128 = vector.load %arg8[%c0_47, %c0_48] : memref<8x128xf32, #tpu.memory_space<vmem>>, vector<8x128xf32>
    tpu.vector_store %arg8[%c0_47, %c0_48], %127 {strides = array<i32>} : memref<8x128xf32, #tpu.memory_space<vmem>>, vector<8x128xf32>,
    return
  }
}

</mosaic_0001>

<llo_original>
// kernel: tpu_custom_call.1
$region0: #{tpu_custom_call.1}
  #allocation0 [shape = 'u32[]', space=smem, size = 0x4, offset = 0x4, fixed_abs, tag = 'smem constant byte address 0x4 - core index']
  #allocation1 [shape = 'u32[72,128]{1,0:T(1,128)}', space=vmem, size = 0x9000, scoped, tag = 'internal scratch']
  %s0 = inlined_call_operand.vmem [shape: bf16[8,48], index: 0, kind: input, shape index: {}]
  %s1 = inlined_call_operand.vmem [shape: bf16[48,96], index: 1, kind: input, shape index: {}]
  %s2 = inlined_call_operand.vmem [shape: bf16[96,32], index: 2, kind: input, shape index: {}]
  %s3 = inlined_call_operand.vmem [shape: bf16[32,96], index: 3, kind: input, shape index: {}]
  %s4 = inlined_call_operand.vmem [shape: bf16[96,48], index: 4, kind: input, shape index: {}]
  %s5 = inlined_call_operand.vmem [shape: bf16[32,4], index: 5, kind: input, shape index: {}]
  %s6 = inlined_call_operand.vmem [shape: f32[15,128], index: 6, kind: input, shape index: {}]
  %s7 = inlined_call_operand.vmem [shape: f32[8,16], index: 7, kind: input, shape index: {}]
  %s8 = inlined_call_operand.hbm [shape: f32[8,128], index: 8, kind: output, shape index: {}]
  %s9 = sld [smem:[#allocation0]]
  $region42: #{tpu_custom_call.1} parent=0
    _
  %s11 = ssub.s32 1, %s9
  %s12 = scalar_select 0, %s11, %s9
  $region1: #{tpu_custom_call.1} parent=0
    #allocation2 [shape = 'u8[4096]{0}', space=vmem, size = 0x1000, scoped, tag = 'output window, operand 0, single buffered']
    #allocation3 [shape = 's32[1]{0}', space=sflag, size = 0x4, scoped, tag = 'scoped memory for tpu_custom_call.1']
    %13 = vsyncpa [#allocation3], 0
    // Predicated region
    $region2: #{tpu_custom_call.1} parent=1 // pred_check
      _
    $region3: #{tpu_custom_call.1} parent=1 // pred_check_branch
      %15 = sbr.rel (0) target = $region5
    $region4: #{tpu_custom_call.1} parent=1 // pred_region
      _
    $region5: #{tpu_custom_call.1} parent=1 // pred_fallthru
      _
    // Predicated region
    $region6: #{tpu_custom_call.1} parent=1 // pred_check
      _
    $region7: #{tpu_custom_call.1} parent=1 // pred_check_branch
      %17 = sbr.rel (0) target = $region9
    $region8: #{tpu_custom_call.1} parent=1 // pred_region
      _
    $region9: #{tpu_custom_call.1} parent=1 // pred_fallthru
      _
    // Predicated region
    $region10: #{tpu_custom_call.1} parent=1 // pred_check
      _
    $region11: #{tpu_custom_call.1} parent=1 // pred_check_branch
      %19 = sbr.rel (0) target = $region13
    $region12: #{tpu_custom_call.1} parent=1 // pred_region
      _
    $region13: #{tpu_custom_call.1} parent=1 // pred_fallthru
      _
    // Predicated region
    $region14: #{tpu_custom_call.1} parent=1 // pred_check
      _
    $region15: #{tpu_custom_call.1} parent=1 // pred_check_branch
      %21 = sbr.rel (0) target = $region17
    $region16: #{tpu_custom_call.1} parent=1 // pred_region
      _
    $region17: #{tpu_custom_call.1} parent=1 // pred_fallthru
      _
    // Predicated region
    $region18: #{tpu_custom_call.1} parent=1 // pred_check
      _
    $region19: #{tpu_custom_call.1} parent=1 // pred_check_branch
      %23 = sbr.rel (0) target = $region21
    $region20: #{tpu_custom_call.1} parent=1 // pred_region
      _
    $region21: #{tpu_custom_call.1} parent=1 // pred_fallthru
      _
    // Predicated region
    $region22: #{tpu_custom_call.1} parent=1 // pred_check
      _
    $region23: #{tpu_custom_call.1} parent=1 // pred_check_branch
      %25 = sbr.rel (0) target = $region25
    $region24: #{tpu_custom_call.1} parent=1 // pred_region
      _
    $region25: #{tpu_custom_call.1} parent=1 // pred_fallthru
      _
    // Predicated region
    $region26: #{tpu_custom_call.1} parent=1 // pred_check
      _
    $region27: #{tpu_custom_call.1} parent=1 // pred_check_branch
      %27 = sbr.rel (0) target = $region29
    $region28: #{tpu_custom_call.1} parent=1 // pred_region
      _
    $region29: #{tpu_custom_call.1} parent=1 // pred_fallthru
      _
    // Predicated region
    $region30: #{tpu_custom_call.1} parent=1 // pred_check
      _
    $region31: #{tpu_custom_call.1} parent=1 // pred_check_branch
      %29 = sbr.rel (0) target = $region33
    $region32: #{tpu_custom_call.1} parent=1 // pred_region
      _
    $region33: #{tpu_custom_call.1} parent=1 // pred_fallthru
      _
    %v31 = vld [vmem:[%s7] sm:$0xff]
    %v32 = vld [vmem:[%s0] sm:$0xf]
    %v33 = vld [vmem:[%s1] sm:$0xf]
    %v34 = vld [vmem:[%s1 + $0x4] sm:$0xf]
    %v35 = vld [vmem:[%s1 + $0x8] sm:$0xf]
    %v36 = vld [vmem:[%s1 + $0xc] sm:$0xf]
    %v37 = vld [vmem:[%s1 + $0x10] sm:$0xf]
    %v38 = vld [vmem:[%s1 + $0x14] sm:$0xf]
    %v39 = vld [vmem:[%s6] sm:$0x1]
    %v40 = vperm.slane %v39, 0
    %v47 = vunpack.c.l.b16 %v33
    %v48 = vunpack.c.l.b16 %v34
    %v49 = vunpack.c.l.b16 %v35
    %v50 = vunpack.c.l.b16 %v36
    %v51 = vunpack.c.l.b16 %v37
    %v52 = vunpack.c.l.b16 %v38
    %v53 = vpack.c.b16 %v48, %v47
    %v54 = vpack.c.b16 %v50, %v49
    %v55 = vpack.c.b16 %v52, %v51
    %vm59 = vcmask 392192
    %v61 = vsel %vm59, %v32, 0
    %63 = vmatpush.bf16.msra.mxu0 0
    %64 = vmatpush.bf16.msra.mxu0 0
    %65 = vmatpush.bf16.msra.mxu0 0
    %66 = vmatpush.bf16.msra.mxu0 0
    %67 = vmatpush.bf16.msra.mxu0 0
    %68 = vmatpush.bf16.msra.mxu0 %v55
    %69 = vmatpush.bf16.msra.mxu0 %v54
    %70 = vmatpush.bf16.msra.mxu0 %v53
    %71 = vmatmul.bf16.gmra.mxu0 %v61
    %v72 = vpop.f32.mrf.mxu0
    %v73 = vadd.f32 %v40, %v72
    %v74 = vpop.f32.mrf.mxu0
    %75 = vdwg.mxu0
    %v76 = vld [vmem:[%s6 + $0x1] sm:$0x1]
    %vm77 = vcmp.ge.f32.partialorder %v73, 0.0
    %v78 = vperm.slane %v76, 0
    %v79 = vmul.f32 %v78, %v73
    %v80 = vsel %vm77, %v73, %v79
    %v81 = vmul.f32 %v80, %v80
    %vm82 = vcmask 130048
    %v84 = vsel %vm82, %v31, 0
    %86 = vmatpush.msra.mxu0 0.0
    %87 = vmatpush.msra.mxu0 0.0
    %88 = vmatpush.msra.mxu0 0.0
    %89 = vmatpush.msra.mxu0 0.0
    %90 = vmatpush.msra.mxu0 0.0
    %91 = vmatpush.msra.mxu0 0.0
    %92 = vmatpush.msra.mxu0 0.0
    %93 = vmatpush.msra.mxu0 0.0
    %94 = vmatpush.msra.mxu0 0.0
    %95 = vmatpush.msra.mxu0 0.0
    %96 = vmatpush.msra.mxu0 0.0
    %97 = vmatpush.msra.mxu0 0.0
    %98 = vmatpush.msra.mxu0 0.0
    %99 = vmatpush.msra.mxu0 0.0
    %100 = vmatpush.msra.mxu0 %v81
    %101 = vmatpush.msra.mxu0 %v80
    %102 = vmatmul.f32.gmra.mxu0 %v84
    %v103 = vpop.f32.mrf.mxu0
    %v104 = vadd.f32 0.0, %v103
    %105 = vdwg.mxu0
    %v106 = vld [vmem:[%s6 + $0x2] sm:$0x1]
    %v107 = vld [vmem:[%s6 + $0x3] sm:$0x1]
    %v108 = vmul.f32 %v104, %v104
    %v110 = vrot.slane %v108, 7
    %v112 = vsub.f32 %v104, %v110
    %v113 = vmax.f32 %v112, 0.0
    %v114 = vperm.slane %v104, 0
    %v115 = vsub.f32 %v80, %v114
    %v116 = vperm.slane %v106, 0
    %v117 = vmul.f32 %v116, %v115
    %v118 = vadd.f32 %v113, 1e-05
    %v119 = vrsqrt.pop %v118
    %v120 = vmul.f32 %v119, %v118
    %v121 = vmul.f32 %v120, %v119
    %v122 = vmul.f32 0.5, %v121
    %v123 = vsub.f32 1.5, %v122
    %v124 = vmul.f32 %v119, %v123
    %vm125 = vweird.f32 %v118
    %vm126 = vweird.f32 %v119
    %vm127 = vmor %vm125, %vm126
    %v128 = vsel %vm127, %v119, %v124
    %v129 = vperm.slane %v128, 1
    %v130 = vmul.f32 %v117, %v129
    %v131 = vperm.slane %v107, 0
    %v132 = vadd.f32 %v130, %v131
    %v133 = vpack.c.bf16 %v132, %v132
    %v134 = vld [vmem:[%s2] sm:$0xf]
    %v135 = vld [vmem:[%s2 + $0x4] sm:$0xf]
    %v136 = vld [vmem:[%s2 + $0x8] sm:$0xf]
    %v137 = vld [vmem:[%s2 + $0xc] sm:$0xf]
    %v138 = vld [vmem:[%s2 + $0x10] sm:$0xf]
    %v139 = vld [vmem:[%s2 + $0x14] sm:$0xf]
    %v140 = vld [vmem:[%s2 + $0x18] sm:$0xf]
    %v141 = vld [vmem:[%s2 + $0x1c] sm:$0xf]
    %v142 = vld [vmem:[%s2 + $0x20] sm:$0xf]
    %v143 = vld [vmem:[%s2 + $0x24] sm:$0xf]
    %v144 = vld [vmem:[%s2 + $0x28] sm:$0xf]
    %v145 = vld [vmem:[%s2 + $0x2c] sm:$0xf]
    %v146 = vld [vmem:[%s6 + $0x4] sm:$0x1]
    %v147 = vperm.slane %v146, 0
    %v160 = vunpack.c.l.b16 %v134
    %v161 = vunpack.c.l.b16 %v135
    %v162 = vunpack.c.l.b16 %v136
    %v163 = vunpack.c.l.b16 %v137
    %v164 = vunpack.c.l.b16 %v138
    %v165 = vunpack.c.l.b16 %v139
    %v166 = vunpack.c.l.b16 %v140
    %v167 = vunpack.c.l.b16 %v141
    %v168 = vunpack.c.l.b16 %v142
    %v169 = vunpack.c.l.b16 %v143
    %v170 = vunpack.c.l.b16 %v144
    %v171 = vunpack.c.l.b16 %v145
    %v172 = vpack.c.b16 %v161, %v160
    %v173 = vpack.c.b16 %v163, %v162
    %v174 = vpack.c.b16 %v165, %v164
    %v175 = vpack.c.b16 %v167, %v166
    %v176 = vpack.c.b16 %v169, %v168
    %v177 = vpack.c.b16 %v171, %v170
    %vm184 = vcmask 785408
    %v186 = vsel %vm184, %v133, 0
    %188 = vmatpush.bf16.msra.mxu0 0
    %189 = vmatpush.bf16.msra.mxu0 0
    %190 = vmatpush.bf16.msra.mxu0 %v177
    %191 = vmatpush.bf16.msra.mxu0 %v176
    %192 = vmatpush.bf16.msra.mxu0 %v175
    %193 = vmatpush.bf16.msra.mxu0 %v174
    %194 = vmatpush.bf16.msra.mxu0 %v173
    %195 = vmatpush.bf16.msra.mxu0 %v172
    %196 = vmatmul.bf16.gmra.mxu0 %v186
    %v197 = vpop.f32.mrf.mxu0
    %v198 = vadd.f32 %v147, %v197
    %v199 = vpop.f32.mrf.mxu0
    %200 = vdwg.mxu0
    %v201 = vmul.f32 %v198, %v198
    %202 = vmatpush.msra.mxu0 0.0
    %203 = vmatpush.msra.mxu0 0.0
    %204 = vmatpush.msra.mxu0 0.0
    %205 = vmatpush.msra.mxu0 0.0
    %206 = vmatpush.msra.mxu0 0.0
    %207 = vmatpush.msra.mxu0 0.0
    %208 = vmatpush.msra.mxu0 0.0
    %209 = vmatpush.msra.mxu0 0.0
    %210 = vmatpush.msra.mxu0 0.0
    %211 = vmatpush.msra.mxu0 0.0
    %212 = vmatpush.msra.mxu0 0.0
    %213 = vmatpush.msra.mxu0 0.0
    %214 = vmatpush.msra.mxu0 0.0
    %215 = vmatpush.msra.mxu0 0.0
    %216 = vmatpush.msra.mxu0 %v201
    %217 = vmatpush.msra.mxu0 %v198
    %218 = vmatmul.f32.gmra.mxu0 %v84
    %v219 = vpop.f32.mrf.mxu0
    %v220 = vadd.f32 0.0, %v219
    %221 = vdwg.mxu0
    %v222 = vld [vmem:[%s6 + $0x5] sm:$0x1]
    %v223 = vld [vmem:[%s6 + $0x6] sm:$0x1]
    %v224 = vmul.f32 %v220, %v220
    %v226 = vrot.slane %v224, 7
    %v228 = vsub.f32 %v220, %v226
    %v229 = vmax.f32 %v228, 0.0
    %v230 = vperm.slane %v220, 0
    %v231 = vsub.f32 %v198, %v230
    %v232 = vperm.slane %v222, 0
    %v233 = vmul.f32 %v232, %v231
    %v234 = vadd.f32 %v229, 1e-05
    %v235 = vrsqrt.pop %v234
    %v236 = vmul.f32 %v235, %v234
    %v237 = vmul.f32 %v236, %v235
    %v238 = vmul.f32 0.5, %v237
    %v239 = vsub.f32 1.5, %v238
    %v240 = vmul.f32 %v235, %v239
    %vm241 = vweird.f32 %v234
    %vm242 = vweird.f32 %v235
    %vm243 = vmor %vm241, %vm242
    %v244 = vsel %vm243, %v235, %v240
    %v245 = vperm.slane %v244, 1
    %v246 = vmul.f32 %v233, %v245
    %v247 = vperm.slane %v223, 0
    %v248 = vadd.f32 %v246, %v247
    %v249 = vpack.c.bf16 %v248, %v248
    %v250 = vld [vmem:[%s3] sm:$0xf]
    %v251 = vld [vmem:[%s3 + $0x4] sm:$0xf]
    %v252 = vld [vmem:[%s3 + $0x8] sm:$0xf]
    %v253 = vld [vmem:[%s3 + $0xc] sm:$0xf]
    %v254 = vld [vmem:[%s6 + $0x7] sm:$0x1]
    %v255 = vperm.slane %v254, 0
    %v260 = vunpack.c.l.b16 %v250
    %v261 = vunpack.c.l.b16 %v251
    %v262 = vunpack.c.l.b16 %v252
    %v263 = vunpack.c.l.b16 %v253
    %v264 = vpack.c.b16 %v261, %v260
    %v265 = vpack.c.b16 %v263, %v262
    %vm268 = vcmask 261120
    %v270 = vsel %vm268, %v249, 0
    %272 = vmatpush.bf16.msra.mxu0 0
    %273 = vmatpush.bf16.msra.mxu0 0
    %274 = vmatpush.bf16.msra.mxu0 0
    %275 = vmatpush.bf16.msra.mxu0 0
    %276 = vmatpush.bf16.msra.mxu0 0
    %277 = vmatpush.bf16.msra.mxu0 0
    %278 = vmatpush.bf16.msra.mxu0 %v265
    %279 = vmatpush.bf16.msra.mxu0 %v264
    %280 = vmatmul.bf16.gmra.mxu0 %v270
    %v281 = vpop.f32.mrf.mxu0
    %v282 = vadd.f32 %v255, %v281
    %v283 = vpop.f32.mrf.mxu0
    %284 = vdwg.mxu0
    %v285 = vld [vmem:[%s6 + $0x8] sm:$0x1]
    %vm286 = vcmp.ge.f32.partialorder %v282, 0.0
    %v287 = vperm.slane %v285, 0
    %v288 = vmul.f32 %v287, %v282
    %v289 = vsel %vm286, %v282, %v288
    %v290 = vmul.f32 %v289, %v289
    %291 = vmatpush.msra.mxu0 0.0
    %292 = vmatpush.msra.mxu0 0.0
    %293 = vmatpush.msra.mxu0 0.0
    %294 = vmatpush.msra.mxu0 0.0
    %295 = vmatpush.msra.mxu0 0.0
    %296 = vmatpush.msra.mxu0 0.0
    %297 = vmatpush.msra.mxu0 0.0
    %298 = vmatpush.msra.mxu0 0.0
    %299 = vmatpush.msra.mxu0 0.0
    %300 = vmatpush.msra.mxu0 0.0
    %301 = vmatpush.msra.mxu0 0.0
    %302 = vmatpush.msra.mxu0 0.0
    %303 = vmatpush.msra.mxu0 0.0
    %304 = vmatpush.msra.mxu0 0.0
    %305 = vmatpush.msra.mxu0 %v290
    %306 = vmatpush.msra.mxu0 %v289
    %307 = vmatmul.f32.gmra.mxu0 %v84
    %v308 = vpop.f32.mrf.mxu0
    %v309 = vadd.f32 0.0, %v308
    %310 = vdwg.mxu0
    %v311 = vld [vmem:[%s6 + $0x9] sm:$0x1]
    %v312 = vld [vmem:[%s6 + $0xa] sm:$0x1]
    %v313 = vmul.f32 %v309, %v309
    %v315 = vrot.slane %v313, 7
    %v317 = vsub.f32 %v309, %v315
    %v318 = vmax.f32 %v317, 0.0
    %v319 = vperm.slane %v309, 0
    %v320 = vsub.f32 %v289, %v319
    %v321 = vperm.slane %v311, 0
    %v322 = vmul.f32 %v321, %v320
    %v323 = vadd.f32 %v318, 1e-05
    %v324 = vrsqrt.pop %v323
    %v325 = vmul.f32 %v324, %v323
    %v326 = vmul.f32 %v325, %v324
    %v327 = vmul.f32 0.5, %v326
    %v328 = vsub.f32 1.5, %v327
    %v329 = vmul.f32 %v324, %v328
    %vm330 = vweird.f32 %v323
    %vm331 = vweird.f32 %v324
    %vm332 = vmor %vm330, %vm331
    %v333 = vsel %vm332, %v324, %v329
    %v334 = vperm.slane %v333, 1
    %v335 = vmul.f32 %v322, %v334
    %v336 = vperm.slane %v312, 0
    %v337 = vadd.f32 %v335, %v336
    %v338 = vpack.c.bf16 %v337, %v337
    %v339 = vld [vmem:[%s4] sm:$0xf]
    %v340 = vld [vmem:[%s4 + $0x4] sm:$0xf]
    %v341 = vld [vmem:[%s4 + $0x8] sm:$0xf]
    %v342 = vld [vmem:[%s4 + $0xc] sm:$0xf]
    %v343 = vld [vmem:[%s4 + $0x10] sm:$0xf]
    %v344 = vld [vmem:[%s4 + $0x14] sm:$0xf]
    %v345 = vld [vmem:[%s4 + $0x18] sm:$0xf]
    %v346 = vld [vmem:[%s4 + $0x1c] sm:$0xf]
    %v347 = vld [vmem:[%s4 + $0x20] sm:$0xf]
    %v348 = vld [vmem:[%s4 + $0x24] sm:$0xf]
    %v349 = vld [vmem:[%s4 + $0x28] sm:$0xf]
    %v350 = vld [vmem:[%s4 + $0x2c] sm:$0xf]
    %v351 = vld [vmem:[%s6 + $0xb] sm:$0x1]
    %v352 = vperm.slane %v351, 0
    %v365 = vunpack.c.l.b16 %v339
    %v366 = vunpack.c.l.b16 %v340
    %v367 = vunpack.c.l.b16 %v341
    %v368 = vunpack.c.l.b16 %v342
    %v369 = vunpack.c.l.b16 %v343
    %v370 = vunpack.c.l.b16 %v344
    %v371 = vunpack.c.l.b16 %v345
    %v372 = vunpack.c.l.b16 %v346
    %v373 = vunpack.c.l.b16 %v347
    %v374 = vunpack.c.l.b16 %v348
    %v375 = vunpack.c.l.b16 %v349
    %v376 = vunpack.c.l.b16 %v350
    %v377 = vpack.c.b16 %v366, %v365
    %v378 = vpack.c.b16 %v368, %v367
    %v379 = vpack.c.b16 %v370, %v369
    %v380 = vpack.c.b16 %v372, %v371
    %v381 = vpack.c.b16 %v374, %v373
    %v382 = vpack.c.b16 %v376, %v375
    %v390 = vsel %vm184, %v338, 0
    %392 = vmatpush.bf16.msra.mxu0 0
    %393 = vmatpush.bf16.msra.mxu0 0
    %394 = vmatpush.bf16.msra.mxu0 %v382
    %395 = vmatpush.bf16.msra.mxu0 %v381
    %396 = vmatpush.bf16.msra.mxu0 %v380
    %397 = vmatpush.bf16.msra.mxu0 %v379
    %398 = vmatpush.bf16.msra.mxu0 %v378
    %399 = vmatpush.bf16.msra.mxu0 %v377
    %400 = vmatmul.bf16.gmra.mxu0 %v390
    %v401 = vpop.f32.mrf.mxu0
    %v402 = vadd.f32 %v352, %v401
    %v403 = vpop.f32.mrf.mxu0
    %404 = vdwg.mxu0
    %v405 = vld [vmem:[%s6 + $0xc] sm:$0x1]
    %v406 = vld [vmem:[%s6 + $0xd] sm:$0x1]
    %v407 = vperm.slane %v405, 0
    %v408 = vmul.f32 %v407, %v231
    %v409 = vmul.f32 %v408, %v245
    %v410 = vperm.slane %v406, 0
    %v411 = vadd.f32 %v409, %v410
    %v412 = vpack.c.bf16 %v411, %v411
    %v413 = vld [vmem:[%s5] sm:$0xf]
    %v414 = vld [vmem:[%s5 + $0x4] sm:$0xf]
    %v415 = vld [vmem:[%s5 + $0x8] sm:$0xf]
    %v416 = vld [vmem:[%s5 + $0xc] sm:$0xf]
    %v417 = vld [vmem:[%s6 + $0xe] sm:$0x1]
    %v418 = vperm.slane %v417, 0
    %v423 = vunpack.c.l.b16 %v413
    %v424 = vunpack.c.l.b16 %v414
    %v425 = vunpack.c.l.b16 %v415
    %v426 = vunpack.c.l.b16 %v416
    %v427 = vpack.c.b16 %v424, %v423
    %v428 = vpack.c.b16 %v426, %v425
    %v432 = vsel %vm268, %v412, 0
    %434 = vmatpush.bf16.msra.mxu0 0
    %435 = vmatpush.bf16.msra.mxu0 0
    %436 = vmatpush.bf16.msra.mxu0 0
    %437 = vmatpush.bf16.msra.mxu0 0
    %438 = vmatpush.bf16.msra.mxu0 0
    %439 = vmatpush.bf16.msra.mxu0 0
    %440 = vmatpush.bf16.msra.mxu0 %v428
    %441 = vmatpush.bf16.msra.mxu0 %v427
    %442 = vmatmul.bf16.gmra.mxu0 %v432
    %v443 = vpop.f32.mrf.mxu0
    %v444 = vadd.f32 %v418, %v443
    %v445 = vpop.f32.mrf.mxu0
    %446 = vdwg.mxu0
    %448 = vrot.lane.b32.xlu0 %v402, 32
    %v449 = vpop.permute.xlu0 %448
    %452 = vrot.lane.b32.xlu0 %v444, 80
    %v453 = vpop.permute.xlu0 %452
    %v455 = vsel %vm268, %v198, %v449
    %vm456 = vcmask 654336
    %v457 = vsel %vm456, %v455, %v453
    %vm458 = vcmask 687104
    %v459 = vsel %vm458, %v457, 0.0
    %460 = vst [vmem:[#allocation2] sm:$0xff] %v459
    // Predicated region
    $region34: #{tpu_custom_call.1} parent=1 // pred_check
      _
    $region35: #{tpu_custom_call.1} parent=1 // pred_check_branch
      %462 = sbr.rel (0) target = $region37
    $region36: #{tpu_custom_call.1} parent=1 // pred_region
      %464 = vsyncadd [#allocation3], 0
      %s466 = sshll.u32 [#allocation2], 4
      %s467 = int_to_ptr.vmem [resolvable:$true] %s466
      %s468 = sshll.u32 %s8, 4
      %s469 = int_to_ptr.hbm [resolvable:$true] %s468
      %471 = dma.vmem_to_hbm [thread:$0]  %s467, 128, %s469, [#allocation3]
    $region37: #{tpu_custom_call.1} parent=1 // pred_fallthru
      _
    // Predicated region
    $region38: #{tpu_custom_call.1} parent=1 // pred_check
      _
    $region39: #{tpu_custom_call.1} parent=1 // pred_check_branch
      %473 = sbr.rel (0) target = $region41
    $region40: #{tpu_custom_call.1} parent=1 // pred_region
      %475 = dma.done [#allocation3], 128
    $region41: #{tpu_custom_call.1} parent=1 // pred_fallthru
      _
    %476 = vsyncpa [#allocation3], 1

</llo_original>
